<compile_context>
chip_gen: v7x
topology: tpu7x:2x2x1
jax: 0.10.0
libtpu: 0.0.40
codegen_flags: <defaults>
</compile_context>

<pallas_src>
import jax
import jax.numpy as jnp
from jax.experimental import pallas as pl
from jax.experimental.pallas import tpu as pltpu


def _round_up(n: int, m: int) -> int:
    return ((n + m - 1) // m) * m


def _cdiv(a: int, b: int) -> int:
    return (a + b - 1) // b


def make_actor_kernel(max_action: float):
    def actor_kernel(x_ref, w1_ref, b1_ref, w2_ref, b2_ref, w3_ref, b3_ref, out_ref):
        # MXU inputs use the weight dtype (bf16 or f32); accumulation is f32.
        # Bias add / ReLU / tanh stay in f32 (v5e has no bf16 VPU/EUP).
        w_dtype = w1_ref.dtype

        # Layer 1: Linear + ReLU
        h1 = jnp.dot(x_ref[...].astype(w_dtype), w1_ref[...],
                     preferred_element_type=jnp.float32)
        h1 = jnp.maximum(h1 + b1_ref[...], 0.0)

        # Layer 2: Linear + ReLU
        h2 = jnp.dot(h1.astype(w_dtype), w2_ref[...],
                     preferred_element_type=jnp.float32)
        h2 = jnp.maximum(h2 + b2_ref[...], 0.0)

        # Layer 3: Linear + Tanh, scaled by max_action (unpadded action_dim cols)
        h3 = jnp.dot(h2.astype(w_dtype), w3_ref[...],
                     preferred_element_type=jnp.float32)
        out_ref[...] = (jnp.tanh(h3 + b3_ref[...]) * max_action).astype(out_ref.dtype)

    return actor_kernel


def prepare_actor_params(params, compute_dtype=jnp.bfloat16):
    """One-time (out of the hot path) weight preparation.

    compute_dtype controls the MXU input dtype for w1/w2/w3. bf16 is the
    recommended default on v5e, v6e and v7x (the MXU needs bf16 inputs for
    peak rate; accumulation and all elementwise math remain f32 in-kernel).
    Biases stay f32.
    """
    return {
        "w1": params["w1"].astype(compute_dtype),
        "w2": params["w2"].astype(compute_dtype),
        "w3": params["w3"].astype(compute_dtype),
        "b1": params["b1"].astype(jnp.float32),
        "b2": params["b2"].astype(jnp.float32),
        "b3": params["b3"].astype(jnp.float32),
    }


def actor_forward(x, prepared, max_action, *, max_tile_b=2048):
    """x: (B, state_dim). prepared: output of prepare_actor_params().

    Returns (B, action_dim) f32.
    """
    B, state_dim = x.shape
    w1, b1 = prepared["w1"], prepared["b1"]
    w2, b2 = prepared["w2"], prepared["b2"]
    w3, b3 = prepared["w3"], prepared["b3"]
    hidden = w1.shape[1]
    action_dim = w3.shape[1]
    w_dtype = w1.dtype

    # Number of batch tiles: respect max_tile_b, and keep >= 2 tiles whenever
    # each tile still holds >= 16 real rows so the "parallel" batch axis can be
    # sharded across v7x's 2 TensorCores. tb = round_up(cdiv(B, n_tiles), 16)
    # keeps per-call batch padding <= 31 rows.
    n_tiles = max(_cdiv(B, max_tile_b), 2 if B >= 32 else 1)
    tb = _round_up(_cdiv(B, n_tiles), 16)
    b_pad = _round_up(B, tb)
    grid = (b_pad // tb,)

    # Cast x to the weight dtype in the wrapper (halves streamed DMA for bf16),
    # then pad the batch to a multiple of tb.
    x = x.astype(w_dtype)
    if b_pad != B:
        x = jnp.pad(x, ((0, b_pad - B), (0, 0)))

    # x / out streamed over the batch grid axis; weights/biases VMEM-resident.
    stream = lambda shape: pl.BlockSpec(shape, lambda i: (i, 0))
    resident = lambda a: pl.BlockSpec(a.shape, lambda i: (0, 0))

    flops = 2 * b_pad * (state_dim * hidden + hidden * hidden + hidden * action_dim)
    bytes_accessed = (
        b_pad * state_dim * x.dtype.itemsize
        + sum(int(a.size) * a.dtype.itemsize for a in (w1, b1, w2, b2, w3, b3))
        + b_pad * action_dim * 4
    )

    out = pl.pallas_call(
        make_actor_kernel(float(max_action)),
        out_shape=jax.ShapeDtypeStruct((b_pad, action_dim), jnp.float32),
        grid=grid,
        in_specs=[
            stream((tb, state_dim)),
            resident(w1), resident(b1),
            resident(w2), resident(b2),
            resident(w3), resident(b3),
        ],
        out_specs=stream((tb, action_dim)),
        compiler_params=pltpu.CompilerParams(
            dimension_semantics=("parallel",),
            vmem_limit_bytes=48 * 1024 * 1024,
        ),
        cost_estimate=pl.CostEstimate(
            flops=flops,
            transcendentals=b_pad * action_dim,
            bytes_accessed=bytes_accessed,
        ),
    )(x, w1, b1, w2, b2, w3, b3)

    return out[:B]


def init_actor_params(key, state_dim, action_dim, hidden=256):
    """Deterministic init mimicking PyTorch nn.Linear default (U(-1/sqrt(fan_in), +))."""
    ks = jax.random.split(key, 6)

    def linear(kw, kb, fan_in, fan_out):
        bound = 1.0 / jnp.sqrt(fan_in)
        w = jax.random.uniform(kw, (fan_in, fan_out), jnp.float32, -bound, bound)
        b = jax.random.uniform(kb, (1, fan_out), jnp.float32, -bound, bound)
        return w, b

    w1, b1 = linear(ks[0], ks[1], state_dim, hidden)
    w2, b2 = linear(ks[2], ks[3], hidden, hidden)
    w3, b3 = linear(ks[4], ks[5], hidden, action_dim)
    return {"w1": w1, "b1": b1, "w2": w2, "b2": b2, "w3": w3, "b3": b3}


def actor_reference(x, p, max_action):
    h1 = jnp.maximum(x @ p["w1"] + p["b1"], 0.0)
    h2 = jnp.maximum(h1 @ p["w2"] + p["b2"], 0.0)
    return jnp.tanh(h2 @ p["w3"] + p["b3"]) * max_action


if __name__ == "__main__":
    key = jax.random.PRNGKey(0)
    k_x, k_x2, k_p = jax.random.split(key, 3)

    batch = 4
    state_dim = 16
    action_dim = 8
    max_action = 2.0

    x = jax.random.normal(k_x, (batch, state_dim), jnp.float32)
    params = init_actor_params(k_p, state_dim, action_dim)
    ref = actor_reference(x, params, max_action)

    # 1) Exact-precision path: f32 MXU inputs -> must match the reference tightly.
    prepared_f32 = prepare_actor_params(params, compute_dtype=jnp.float32)
    out_f32 = jax.block_until_ready(actor_forward(x, prepared_f32, max_action))
    assert out_f32.shape == (batch, action_dim)
    assert jnp.allclose(out_f32, ref, atol=1e-5, rtol=1e-5), "f32 mismatch vs reference"

    # 2) Performance path: bf16 MXU inputs, f32 accumulation / elementwise.
    prepared_bf16 = prepare_actor_params(params, compute_dtype=jnp.bfloat16)
    out_bf16 = jax.block_until_ready(actor_forward(x, prepared_bf16, max_action))
    assert out_bf16.shape == (batch, action_dim)
    assert jnp.allclose(out_bf16, ref, atol=5e-2, rtol=5e-2), "bf16 mismatch vs reference"

    # 3) Multi-tile path: batch large enough to split into >= 2 grid steps
    #    (exercises batch padding + the 2-TC parallel axis logic).
    batch2 = 37
    x2 = jax.random.normal(k_x2, (batch2, state_dim), jnp.float32)
    ref2 = actor_reference(x2, params, max_action)
    out2 = jax.block_until_ready(actor_forward(x2, prepared_f32, max_action))
    assert out2.shape == (batch2, action_dim)
    assert jnp.allclose(out2, ref2, atol=1e-5, rtol=1e-5), "multi-tile mismatch vs reference"

    print("KERNEL_OK")
</pallas_src>

<mosaic_0001>
module attributes {stable_mosaic.version = 11 : i64} {
  func.func @actor_kernel(%arg0: i32, %arg1: memref<16x16xf32, #tpu.memory_space<vmem>>, %arg2: memref<16x256xf32, #tpu.memory_space<vmem>>, %arg3: memref<1x256xf32, #tpu.memory_space<vmem>>, %arg4: memref<256x256xf32, #tpu.memory_space<vmem>>, %arg5: memref<1x256xf32, #tpu.memory_space<vmem>>, %arg6: memref<256x8xf32, #tpu.memory_space<vmem>>, %arg7: memref<1x8xf32, #tpu.memory_space<vmem>>, %arg8: memref<16x8xf32, #tpu.memory_space<vmem>>) attributes {dimension_semantics = [#tpu.dimension_semantics<parallel>], iteration_bounds = array<i64: 1>, scalar_prefetch = 0 : i64, scratch_operands = 0 : i64, tpu.core_type = #tpu.core_type<tc>, window_params = [{transform_indices = @transform_0, window_bounds = array<i64: 16, 16>}, {pipeline_mode = #tpu.pipeline_mode<synchronous>, transform_indices = @transform_1, window_bounds = array<i64: 16, 256>}, {pipeline_mode = #tpu.pipeline_mode<synchronous>, transform_indices = @transform_2, window_bounds = array<i64: 1, 256>}, {pipeline_mode = #tpu.pipeline_mode<synchronous>, transform_indices = @transform_3, window_bounds = array<i64: 256, 256>}, {pipeline_mode = #tpu.pipeline_mode<synchronous>, transform_indices = @transform_4, window_bounds = array<i64: 1, 256>}, {pipeline_mode = #tpu.pipeline_mode<synchronous>, transform_indices = @transform_5, window_bounds = array<i64: 256, 8>}, {pipeline_mode = #tpu.pipeline_mode<synchronous>, transform_indices = @transform_6, window_bounds = array<i64: 1, 8>}, {transform_indices = @transform_7, window_bounds = array<i64: 16, 8>}]} {
    %c0 = arith.constant 0 : index
    %c0_0 = arith.constant 0 : index
    %0 = vector.load %arg1[%c0, %c0_0] : memref<16x16xf32, #tpu.memory_space<vmem>>, vector<16x16xf32>
    %c0_1 = arith.constant 0 : index
    %c0_2 = arith.constant 0 : index
    %1 = vector.load %arg2[%c0_1, %c0_2] : memref<16x256xf32, #tpu.memory_space<vmem>>, vector<16x256xf32>
    %cst = arith.constant dense<0.000000e+00> : vector<16x256xf32>
    %2 = tpu.matmul %0, %1, %cst {dimension_numbers = #tpu.dot_dimension_numbers<[1], [0], [0], [1], [0, 0, 1, 1], [], []>} : vector<16x16xf32>, vector<16x256xf32>, vector<16x256xf32> -> vector<16x256xf32>
    %c0_3 = arith.constant 0 : index
    %c0_4 = arith.constant 0 : index
    %3 = vector.load %arg3[%c0_3, %c0_4] : memref<1x256xf32, #tpu.memory_space<vmem>>, vector<1x256xf32>
    %4 = vector.broadcast %3 : vector<1x256xf32> to vector<16x256xf32>
    %5 = arith.addf %2, %4 : vector<16x256xf32>
    %cst_5 = arith.constant 0.000000e+00 : f32
    %6 = vector.broadcast %cst_5 : f32 to vector<16x256xf32>
    %7 = arith.maximumf %5, %6 : vector<16x256xf32>
    %c0_6 = arith.constant 0 : index
    %c0_7 = arith.constant 0 : index
    %8 = vector.load %arg4[%c0_6, %c0_7] : memref<256x256xf32, #tpu.memory_space<vmem>>, vector<256x256xf32>
    %cst_8 = arith.constant dense<0.000000e+00> : vector<16x256xf32>
    %9 = tpu.matmul %7, %8, %cst_8 {dimension_numbers = #tpu.dot_dimension_numbers<[1], [0], [0], [1], [0, 0, 1, 1], [], []>} : vector<16x256xf32>, vector<256x256xf32>, vector<16x256xf32> -> vector<16x256xf32>
    %c0_9 = arith.constant 0 : index
    %c0_10 = arith.constant 0 : index
    %10 = vector.load %arg5[%c0_9, %c0_10] : memref<1x256xf32, #tpu.memory_space<vmem>>, vector<1x256xf32>
    %11 = vector.broadcast %10 : vector<1x256xf32> to vector<16x256xf32>
    %12 = arith.addf %9, %11 : vector<16x256xf32>
    %cst_11 = arith.constant 0.000000e+00 : f32
    %13 = vector.broadcast %cst_11 : f32 to vector<16x256xf32>
    %14 = arith.maximumf %12, %13 : vector<16x256xf32>
    %c0_12 = arith.constant 0 : index
    %c0_13 = arith.constant 0 : index
    %15 = vector.load %arg6[%c0_12, %c0_13] : memref<256x8xf32, #tpu.memory_space<vmem>>, vector<256x8xf32>
    %cst_14 = arith.constant dense<0.000000e+00> : vector<16x8xf32>
    %16 = tpu.matmul %14, %15, %cst_14 {dimension_numbers = #tpu.dot_dimension_numbers<[1], [0], [0], [1], [0, 0, 1, 1], [], []>} : vector<16x256xf32>, vector<256x8xf32>, vector<16x8xf32> -> vector<16x8xf32>
    %c0_15 = arith.constant 0 : index
    %c0_16 = arith.constant 0 : index
    %17 = vector.load %arg7[%c0_15, %c0_16] : memref<1x8xf32, #tpu.memory_space<vmem>>, vector<1x8xf32>
    %18 = vector.broadcast %17 : vector<1x8xf32> to vector<16x8xf32>
    %19 = arith.addf %16, %18 : vector<16x8xf32>
    %20 = math.tanh %19 : vector<16x8xf32>
    %cst_17 = arith.constant 2.000000e+00 : f32
    %21 = vector.broadcast %cst_17 : f32 to vector<16x8xf32>
    %22 = arith.mulf %20, %21 : vector<16x8xf32>
    %c0_18 = arith.constant 0 : index
    %c0_19 = arith.constant 0 : index
    %23 = vector.load %arg8[%c0_18, %c0_19] : memref<16x8xf32, #tpu.memory_space<vmem>>, vector<16x8xf32>
    tpu.vector_store %arg8[%c0_18, %c0_19], %22 {strides = array<i32>} : memref<16x8xf32, #tpu.memory_space<vmem>>, vector<16x8xf32>,
    return
  }
  func.func @transform_0(%arg0: i32) -> (i32, i32) {
    %c0_i32 = arith.constant 0 : i32
    %c0_i32_0 = arith.constant 0 : i32
    return %arg0, %c0_i32 : i32, i32
  }
  func.func @transform_1(%arg0: i32) -> (i32, i32) {
    %c0_i32 = arith.constant 0 : i32
    %c0_i32_0 = arith.constant 0 : i32
    %c0_i32_1 = arith.constant 0 : i32
    return %c0_i32, %c0_i32_0 : i32, i32
  }
  func.func @transform_2(%arg0: i32) -> (i32, i32) {
    %c0_i32 = arith.constant 0 : i32
    %c0_i32_0 = arith.constant 0 : i32
    %c0_i32_1 = arith.constant 0 : i32
    return %c0_i32, %c0_i32_0 : i32, i32
  }
  func.func @transform_3(%arg0: i32) -> (i32, i32) {
    %c0_i32 = arith.constant 0 : i32
    %c0_i32_0 = arith.constant 0 : i32
    %c0_i32_1 = arith.constant 0 : i32
    return %c0_i32, %c0_i32_0 : i32, i32
  }
  func.func @transform_4(%arg0: i32) -> (i32, i32) {
    %c0_i32 = arith.constant 0 : i32
    %c0_i32_0 = arith.constant 0 : i32
    %c0_i32_1 = arith.constant 0 : i32
    return %c0_i32, %c0_i32_0 : i32, i32
  }
  func.func @transform_5(%arg0: i32) -> (i32, i32) {
    %c0_i32 = arith.constant 0 : i32
    %c0_i32_0 = arith.constant 0 : i32
    %c0_i32_1 = arith.constant 0 : i32
    return %c0_i32, %c0_i32_0 : i32, i32
  }
  func.func @transform_6(%arg0: i32) -> (i32, i32) {
    %c0_i32 = arith.constant 0 : i32
    %c0_i32_0 = arith.constant 0 : i32
    %c0_i32_1 = arith.constant 0 : i32
    return %c0_i32, %c0_i32_0 : i32, i32
  }
  func.func @transform_7(%arg0: i32) -> (i32, i32) {
    %c0_i32 = arith.constant 0 : i32
    %c0_i32_0 = arith.constant 0 : i32
    return %arg0, %c0_i32 : i32, i32
  }
}

</mosaic_0001>

<llo_original>
// kernel: tpu_custom_call.1
$region0: #{tpu_custom_call.1}
  #allocation0 [shape = 'u32[]', space=smem, size = 0x4, offset = 0x4, fixed_abs, tag = 'smem constant byte address 0x4 - core index']
  #allocation1 [shape = 'u32[144,128]{1,0:T(1,128)}', space=vmem, size = 0x12000, scoped, tag = 'internal scratch']
  %s0 = inlined_call_operand.vmem [shape: f32[16,16], index: 0, kind: input, shape index: {}]
  %s1 = inlined_call_operand.vmem [shape: f32[16,256], index: 1, kind: input, shape index: {}]
  %s2 = inlined_call_operand.vmem [shape: f32[1,256], index: 2, kind: input, shape index: {}]
  %s3 = inlined_call_operand.hbm [shape: f32[256,256], index: 3, kind: input, shape index: {}]
  %s4 = inlined_call_operand.vmem [shape: f32[1,256], index: 4, kind: input, shape index: {}]
  %s5 = inlined_call_operand.vmem [shape: f32[256,8], index: 5, kind: input, shape index: {}]
  %s6 = inlined_call_operand.vmem [shape: f32[1,8], index: 6, kind: input, shape index: {}]
  %s7 = inlined_call_operand.vmem [shape: f32[16,8], index: 7, kind: output, shape index: {}]
  %s8 = sld [smem:[#allocation0]]
  $region42: #{tpu_custom_call.1} parent=0
    _
  %s10 = ssub.s32 1, %s8
  %s11 = scalar_select 0, %s10, %s8
  $region1: #{tpu_custom_call.1} parent=0
    #allocation2 [shape = 'u8[262144]{0}', space=vmem, size = 0x40000, scoped, tag = 'input window, operand 3, single buffered']
    #allocation3 [shape = 's32[1]{0}', space=sflag, size = 0x4, scoped, tag = 'scoped memory for tpu_custom_call.1']
    %12 = vsyncpa [#allocation3], 0
    // Predicated region
    $region2: #{tpu_custom_call.1} parent=1 // pred_check
      _
    $region3: #{tpu_custom_call.1} parent=1 // pred_check_branch
      %14 = sbr.rel (0) target = $region5
    $region4: #{tpu_custom_call.1} parent=1 // pred_region
      _
    $region5: #{tpu_custom_call.1} parent=1 // pred_fallthru
      _
    // Predicated region
    $region6: #{tpu_custom_call.1} parent=1 // pred_check
      _
    $region7: #{tpu_custom_call.1} parent=1 // pred_check_branch
      %16 = sbr.rel (0) target = $region9
    $region8: #{tpu_custom_call.1} parent=1 // pred_region
      _
    $region9: #{tpu_custom_call.1} parent=1 // pred_fallthru
      _
    // Predicated region
    $region10: #{tpu_custom_call.1} parent=1 // pred_check
      _
    $region11: #{tpu_custom_call.1} parent=1 // pred_check_branch
      %18 = sbr.rel (0) target = $region13
    $region12: #{tpu_custom_call.1} parent=1 // pred_region
      _
    $region13: #{tpu_custom_call.1} parent=1 // pred_fallthru
      _
    // Predicated region
    $region14: #{tpu_custom_call.1} parent=1 // pred_check
      _
    $region15: #{tpu_custom_call.1} parent=1 // pred_check_branch
      %20 = sbr.rel (0) target = $region17
    $region16: #{tpu_custom_call.1} parent=1 // pred_region
      %s22 = ssub.s32 8192, 8192
      %23 = vsyncadd [#allocation3], %s22
      %s24 = sshll.u32 [#allocation2], 4
      %s25 = int_to_ptr.vmem [resolvable:$true] %s24
      %30 = dma.hbm_to_vmem [thread:$0]  %s3, 8192, %s25, [#allocation3], 256, 256, 16
    $region17: #{tpu_custom_call.1} parent=1 // pred_fallthru
      _
    // Predicated region
    $region18: #{tpu_custom_call.1} parent=1 // pred_check
      _
    $region19: #{tpu_custom_call.1} parent=1 // pred_check_branch
      %32 = sbr.rel (0) target = $region21
    $region20: #{tpu_custom_call.1} parent=1 // pred_region
      _
    $region21: #{tpu_custom_call.1} parent=1 // pred_fallthru
      _
    // Predicated region
    $region22: #{tpu_custom_call.1} parent=1 // pred_check
      _
    $region23: #{tpu_custom_call.1} parent=1 // pred_check_branch
      %34 = sbr.rel (0) target = $region25
    $region24: #{tpu_custom_call.1} parent=1 // pred_region
      _
    $region25: #{tpu_custom_call.1} parent=1 // pred_fallthru
      _
    // Predicated region
    $region26: #{tpu_custom_call.1} parent=1 // pred_check
      _
    $region27: #{tpu_custom_call.1} parent=1 // pred_check_branch
      %36 = sbr.rel (0) target = $region29
    $region28: #{tpu_custom_call.1} parent=1 // pred_region
      _
    $region29: #{tpu_custom_call.1} parent=1 // pred_fallthru
      _
    // Predicated region
    $region30: #{tpu_custom_call.1} parent=1 // pred_check
      _
    $region31: #{tpu_custom_call.1} parent=1 // pred_check_branch
      %38 = sbr.rel (0) target = $region33
    $region32: #{tpu_custom_call.1} parent=1 // pred_region
      %39 = dma.done [#allocation3], 8192
    $region33: #{tpu_custom_call.1} parent=1 // pred_fallthru
      _
    %v40 = vld [vmem:[%s0] sm:$0xff]
    %v41 = vld [vmem:[%s0 + $0x8] sm:$0xff]
    %v42 = vld [vmem:[%s1] sm:$0xff]
    %v43 = vld [vmem:[%s1 + $0x8] sm:$0xff]
    %v44 = vld [vmem:[%s1 + $0x10] sm:$0xff]
    %v45 = vld [vmem:[%s1 + $0x18] sm:$0xff]
    %v46 = vld [vmem:[%s2] sm:$0x3]
    %v48 = vlaneseq
    %v49 = vshrl.u32 %v48, 7
    %v50 = vsub.s32 0, %v49
    %v51 = vrot.slane %v46, %v50
    %v52 = vlaneseq
    %v53 = vshrl.u32 %v52, 7
    %v54 = vsub.s32 1, %v53
    %v55 = vrot.slane %v46, %v54
    %vm58 = vcmask 130048
    %v60 = vsel %vm58, %v40, 0
    %v63 = vsel %vm58, %v41, 0
    %65 = vmatprep.subr.mxu0 %v43
    %66 = vmatpush1.msra.mxu0 %v42
    %67 = vmatprep.subr.mxu0 %v45
    %68 = vmatpush1.msra.mxu0 %v44
    %69 = vmatprep.subr.mxu0 0.0
    %70 = vmatpush1.msra.mxu0 0.0
    %71 = vmatprep.subr.mxu0 0.0
    %72 = vmatpush1.msra.mxu0 0.0
    %73 = vmatprep.subr.mxu0 0.0
    %74 = vmatpush1.msra.mxu0 0.0
    %75 = vmatprep.subr.mxu0 0.0
    %76 = vmatpush1.msra.mxu0 0.0
    %77 = vmatprep.subr.mxu0 0.0
    %78 = vmatpush1.msra.mxu0 0.0
    %79 = vmatprep.subr.mxu0 0.0
    %80 = vmatpush1.msra.mxu0 0.0
    %81 = vmatprep.subr.mxu0 0.0
    %82 = vmatpush1.msra.mxu0 0.0
    %83 = vmatprep.subr.mxu0 0.0
    %84 = vmatpush1.msra.mxu0 0.0
    %85 = vmatprep.subr.mxu0 0.0
    %86 = vmatpush1.msra.mxu0 0.0
    %87 = vmatprep.subr.mxu0 0.0
    %88 = vmatpush1.msra.mxu0 0.0
    %89 = vmatprep.subr.mxu0 0.0
    %90 = vmatpush1.msra.mxu0 0.0
    %91 = vmatprep.subr.mxu0 0.0
    %92 = vmatpush1.msra.mxu0 0.0
    %93 = vmatprep.subr.mxu0 0.0
    %94 = vmatpush1.msra.mxu0 0.0
    %95 = vmatprep.subr.mxu0 0.0
    %96 = vmatpush1.msra.mxu0 0.0
    %97 = vmatprep.subr.mxu0 0.0
    %98 = vmatpush1.msra.mxu0 0.0
    %99 = vmatprep.subr.mxu0 0.0
    %100 = vmatpush1.msra.mxu0 0.0
    %101 = vmatprep.subr.mxu0 0.0
    %102 = vmatpush1.msra.mxu0 0.0
    %103 = vmatprep.subr.mxu0 0.0
    %104 = vmatpush1.msra.mxu0 0.0
    %105 = vmatprep.subr.mxu0 0.0
    %106 = vmatpush1.msra.mxu0 0.0
    %107 = vmatprep.subr.mxu0 0.0
    %108 = vmatpush1.msra.mxu0 0.0
    %109 = vmatprep.subr.mxu0 0.0
    %110 = vmatpush1.msra.mxu0 0.0
    %111 = vmatprep.subr.mxu0 0.0
    %112 = vmatpush1.msra.mxu0 0.0
    %113 = vmatprep.subr.mxu0 0.0
    %114 = vmatpush1.msra.mxu0 0.0
    %115 = vmatprep.subr.mxu0 0.0
    %116 = vmatpush1.msra.mxu0 0.0
    %117 = vmatprep.subr.mxu0 0.0
    %118 = vmatpush1.msra.mxu0 0.0
    %119 = vmatprep.subr.mxu0 0.0
    %120 = vmatpush1.msra.mxu0 0.0
    %121 = vmatprep.subr.mxu0 0.0
    %122 = vmatpush1.msra.mxu0 0.0
    %123 = vmatprep.subr.mxu0 0.0
    %124 = vmatpush1.msra.mxu0 0.0
    %125 = vmatprep.subr.mxu0 0.0
    %126 = vmatpush1.msra.mxu0 0.0
    %127 = vmatprep.subr.mxu0 0.0
    %128 = vmatpush1.msra.mxu0 0.0
    %129 = vmatprep.mubr.f32.mxu0 0.0
    %130 = vmatmul.mubr.f32.gmra.mrb[0].mxu0 %v60
    %v131 = vpop.f32.mrb[0].mxu0
    %v132 = vadd.f32 %v51, %v131
    %v133 = vpop.f32.mrb[0].mxu0
    %v134 = vadd.f32 %v55, %v133
    %135 = vmatprep.mubr.f32.mxu0 0.0
    %136 = vmatmul.mubr.f32.gmra.mrb[0].mxu0 %v63
    %v137 = vpop.f32.mrb[0].mxu0
    %v138 = vadd.f32 %v51, %v137
    %v139 = vpop.f32.mrb[0].mxu0
    %v140 = vadd.f32 %v55, %v139
    %141 = vdwg.mxu0
    %v142 = vmax.f32 %v132, 0.0
    %v143 = vmax.f32 %v134, 0.0
    %v144 = vmax.f32 %v138, 0.0
    %v145 = vmax.f32 %v140, 0.0
    %v146 = vld [vmem:[#allocation2] sm:$0xff]
    %v147 = vld [vmem:[#allocation2 + $0x8] sm:$0xff]
    %v148 = vld [vmem:[#allocation2 + $0x10] sm:$0xff]
    %v149 = vld [vmem:[#allocation2 + $0x18] sm:$0xff]
    %v150 = vld [vmem:[#allocation2 + $0x20] sm:$0xff]
    %v151 = vld [vmem:[#allocation2 + $0x28] sm:$0xff]
    %v152 = vld [vmem:[#allocation2 + $0x30] sm:$0xff]
    %v153 = vld [vmem:[#allocation2 + $0x38] sm:$0xff]
    %v154 = vld [vmem:[#allocation2 + $0x40] sm:$0xff]
    %v155 = vld [vmem:[#allocation2 + $0x48] sm:$0xff]
    %v156 = vld [vmem:[#allocation2 + $0x50] sm:$0xff]
    %v157 = vld [vmem:[#allocation2 + $0x58] sm:$0xff]
    %v158 = vld [vmem:[#allocation2 + $0x60] sm:$0xff]
    %v159 = vld [vmem:[#allocation2 + $0x68] sm:$0xff]
    %v160 = vld [vmem:[#allocation2 + $0x70] sm:$0xff]
    %v161 = vld [vmem:[#allocation2 + $0x78] sm:$0xff]
    %v162 = vld [vmem:[#allocation2 + $0x80] sm:$0xff]
    %v163 = vld [vmem:[#allocation2 + $0x88] sm:$0xff]
    %v164 = vld [vmem:[#allocation2 + $0x90] sm:$0xff]
    %v165 = vld [vmem:[#allocation2 + $0x98] sm:$0xff]
    %v166 = vld [vmem:[#allocation2 + $0xa0] sm:$0xff]
    %v167 = vld [vmem:[#allocation2 + $0xa8] sm:$0xff]
    %v168 = vld [vmem:[#allocation2 + $0xb0] sm:$0xff]
    %v169 = vld [vmem:[#allocation2 + $0xb8] sm:$0xff]
    %v170 = vld [vmem:[#allocation2 + $0xc0] sm:$0xff]
    %v171 = vld [vmem:[#allocation2 + $0xc8] sm:$0xff]
    %v172 = vld [vmem:[#allocation2 + $0xd0] sm:$0xff]
    %v173 = vld [vmem:[#allocation2 + $0xd8] sm:$0xff]
    %v174 = vld [vmem:[#allocation2 + $0xe0] sm:$0xff]
    %v175 = vld [vmem:[#allocation2 + $0xe8] sm:$0xff]
    %v176 = vld [vmem:[#allocation2 + $0xf0] sm:$0xff]
    %v177 = vld [vmem:[#allocation2 + $0xf8] sm:$0xff]
    %v178 = vld [vmem:[#allocation2 + $0x100] sm:$0xff]
    %v179 = vld [vmem:[#allocation2 + $0x108] sm:$0xff]
    %v180 = vld [vmem:[#allocation2 + $0x110] sm:$0xff]
    %v181 = vld [vmem:[#allocation2 + $0x118] sm:$0xff]
    %v182 = vld [vmem:[#allocation2 + $0x120] sm:$0xff]
    %v183 = vld [vmem:[#allocation2 + $0x128] sm:$0xff]
    %v184 = vld [vmem:[#allocation2 + $0x130] sm:$0xff]
    %v185 = vld [vmem:[#allocation2 + $0x138] sm:$0xff]
    %v186 = vld [vmem:[#allocation2 + $0x140] sm:$0xff]
    %v187 = vld [vmem:[#allocation2 + $0x148] sm:$0xff]
    %v188 = vld [vmem:[#allocation2 + $0x150] sm:$0xff]
    %v189 = vld [vmem:[#allocation2 + $0x158] sm:$0xff]
    %v190 = vld [vmem:[#allocation2 + $0x160] sm:$0xff]
    %v191 = vld [vmem:[#allocation2 + $0x168] sm:$0xff]
    %v192 = vld [vmem:[#allocation2 + $0x170] sm:$0xff]
    %v193 = vld [vmem:[#allocation2 + $0x178] sm:$0xff]
    %v194 = vld [vmem:[#allocation2 + $0x180] sm:$0xff]
    %v195 = vld [vmem:[#allocation2 + $0x188] sm:$0xff]
    %v196 = vld [vmem:[#allocation2 + $0x190] sm:$0xff]
    %v197 = vld [vmem:[#allocation2 + $0x198] sm:$0xff]
    %v198 = vld [vmem:[#allocation2 + $0x1a0] sm:$0xff]
    %v199 = vld [vmem:[#allocation2 + $0x1a8] sm:$0xff]
    %v200 = vld [vmem:[#allocation2 + $0x1b0] sm:$0xff]
    %v201 = vld [vmem:[#allocation2 + $0x1b8] sm:$0xff]
    %v202 = vld [vmem:[#allocation2 + $0x1c0] sm:$0xff]
    %v203 = vld [vmem:[#allocation2 + $0x1c8] sm:$0xff]
    %v204 = vld [vmem:[#allocation2 + $0x1d0] sm:$0xff]
    %v205 = vld [vmem:[#allocation2 + $0x1d8] sm:$0xff]
    %v206 = vld [vmem:[#allocation2 + $0x1e0] sm:$0xff]
    %v207 = vld [vmem:[#allocation2 + $0x1e8] sm:$0xff]
    %v208 = vld [vmem:[#allocation2 + $0x1f0] sm:$0xff]
    %v209 = vld [vmem:[#allocation2 + $0x1f8] sm:$0xff]
    %v210 = vld [vmem:[%s4] sm:$0x3]
    %v212 = vlaneseq
    %v213 = vshrl.u32 %v212, 7
    %v214 = vsub.s32 0, %v213
    %v215 = vrot.slane %v210, %v214
    %v216 = vlaneseq
    %v217 = vshrl.u32 %v216, 7
    %v218 = vsub.s32 1, %v217
    %v219 = vrot.slane %v210, %v218
    %222 = vmatprep.subr.mxu0 %v147
    %223 = vmatpush1.msra.mxu0 %v146
    %224 = vmatprep.subr.mxu0 %v149
    %225 = vmatpush1.msra.mxu0 %v148
    %226 = vmatprep.subr.mxu0 %v151
    %227 = vmatpush1.msra.mxu0 %v150
    %228 = vmatprep.subr.mxu0 %v153
    %229 = vmatpush1.msra.mxu0 %v152
    %230 = vmatprep.subr.mxu0 %v155
    %231 = vmatpush1.msra.mxu0 %v154
    %232 = vmatprep.subr.mxu0 %v157
    %233 = vmatpush1.msra.mxu0 %v156
    %234 = vmatprep.subr.mxu0 %v159
    %235 = vmatpush1.msra.mxu0 %v158
    %236 = vmatprep.subr.mxu0 %v161
    %237 = vmatpush1.msra.mxu0 %v160
    %238 = vmatprep.subr.mxu0 %v163
    %239 = vmatpush1.msra.mxu0 %v162
    %240 = vmatprep.subr.mxu0 %v165
    %241 = vmatpush1.msra.mxu0 %v164
    %242 = vmatprep.subr.mxu0 %v167
    %243 = vmatpush1.msra.mxu0 %v166
    %244 = vmatprep.subr.mxu0 %v169
    %245 = vmatpush1.msra.mxu0 %v168
    %246 = vmatprep.subr.mxu0 %v171
    %247 = vmatpush1.msra.mxu0 %v170
    %248 = vmatprep.subr.mxu0 %v173
    %249 = vmatpush1.msra.mxu0 %v172
    %250 = vmatprep.subr.mxu0 %v175
    %251 = vmatpush1.msra.mxu0 %v174
    %252 = vmatprep.subr.mxu0 %v177
    %253 = vmatpush1.msra.mxu0 %v176
    %254 = vmatprep.subr.mxu0 %v179
    %255 = vmatpush1.msra.mxu0 %v178
    %256 = vmatprep.subr.mxu0 %v181
    %257 = vmatpush1.msra.mxu0 %v180
    %258 = vmatprep.subr.mxu0 %v183
    %259 = vmatpush1.msra.mxu0 %v182
    %260 = vmatprep.subr.mxu0 %v185
    %261 = vmatpush1.msra.mxu0 %v184
    %262 = vmatprep.subr.mxu0 %v187
    %263 = vmatpush1.msra.mxu0 %v186
    %264 = vmatprep.subr.mxu0 %v189
    %265 = vmatpush1.msra.mxu0 %v188
    %266 = vmatprep.subr.mxu0 %v191
    %267 = vmatpush1.msra.mxu0 %v190
    %268 = vmatprep.subr.mxu0 %v193
    %269 = vmatpush1.msra.mxu0 %v192
    %270 = vmatprep.subr.mxu0 %v195
    %271 = vmatpush1.msra.mxu0 %v194
    %272 = vmatprep.subr.mxu0 %v197
    %273 = vmatpush1.msra.mxu0 %v196
    %274 = vmatprep.subr.mxu0 %v199
    %275 = vmatpush1.msra.mxu0 %v198
    %276 = vmatprep.subr.mxu0 %v201
    %277 = vmatpush1.msra.mxu0 %v200
    %278 = vmatprep.subr.mxu0 %v203
    %279 = vmatpush1.msra.mxu0 %v202
    %280 = vmatprep.subr.mxu0 %v205
    %281 = vmatpush1.msra.mxu0 %v204
    %282 = vmatprep.subr.mxu0 %v207
    %283 = vmatpush1.msra.mxu0 %v206
    %284 = vmatprep.subr.mxu0 %v209
    %285 = vmatpush1.msra.mxu0 %v208
    %286 = vmatprep.mubr.f32.mxu0 %v143
    %287 = vmatmul.mubr.f32.gmra.mrb[0].mxu0 %v142
    %v288 = vpop.f32.mrb[0].mxu0
    %v289 = vadd.f32 %v215, %v288
    %v290 = vpop.f32.mrb[0].mxu0
    %v291 = vadd.f32 %v219, %v290
    %292 = vmatprep.mubr.f32.mxu0 %v145
    %293 = vmatmul.mubr.f32.gmra.mrb[0].mxu0 %v144
    %v294 = vpop.f32.mrb[0].mxu0
    %v295 = vadd.f32 %v215, %v294
    %v296 = vpop.f32.mrb[0].mxu0
    %v297 = vadd.f32 %v219, %v296
    %298 = vdwg.mxu0
    %v299 = vmax.f32 %v289, 0.0
    %v300 = vmax.f32 %v291, 0.0
    %v301 = vmax.f32 %v295, 0.0
    %v302 = vmax.f32 %v297, 0.0
    %v303 = vld [vmem:[%s5] sm:$0xff]
    %v304 = vld [vmem:[%s5 + $0x8] sm:$0xff]
    %v305 = vld [vmem:[%s5 + $0x10] sm:$0xff]
    %v306 = vld [vmem:[%s5 + $0x18] sm:$0xff]
    %v307 = vld [vmem:[%s5 + $0x20] sm:$0xff]
    %v308 = vld [vmem:[%s5 + $0x28] sm:$0xff]
    %v309 = vld [vmem:[%s5 + $0x30] sm:$0xff]
    %v310 = vld [vmem:[%s5 + $0x38] sm:$0xff]
    %v311 = vld [vmem:[%s5 + $0x40] sm:$0xff]
    %v312 = vld [vmem:[%s5 + $0x48] sm:$0xff]
    %v313 = vld [vmem:[%s5 + $0x50] sm:$0xff]
    %v314 = vld [vmem:[%s5 + $0x58] sm:$0xff]
    %v315 = vld [vmem:[%s5 + $0x60] sm:$0xff]
    %v316 = vld [vmem:[%s5 + $0x68] sm:$0xff]
    %v317 = vld [vmem:[%s5 + $0x70] sm:$0xff]
    %v318 = vld [vmem:[%s5 + $0x78] sm:$0xff]
    %v319 = vld [vmem:[%s5 + $0x80] sm:$0xff]
    %v320 = vld [vmem:[%s5 + $0x88] sm:$0xff]
    %v321 = vld [vmem:[%s5 + $0x90] sm:$0xff]
    %v322 = vld [vmem:[%s5 + $0x98] sm:$0xff]
    %v323 = vld [vmem:[%s5 + $0xa0] sm:$0xff]
    %v324 = vld [vmem:[%s5 + $0xa8] sm:$0xff]
    %v325 = vld [vmem:[%s5 + $0xb0] sm:$0xff]
    %v326 = vld [vmem:[%s5 + $0xb8] sm:$0xff]
    %v327 = vld [vmem:[%s5 + $0xc0] sm:$0xff]
    %v328 = vld [vmem:[%s5 + $0xc8] sm:$0xff]
    %v329 = vld [vmem:[%s5 + $0xd0] sm:$0xff]
    %v330 = vld [vmem:[%s5 + $0xd8] sm:$0xff]
    %v331 = vld [vmem:[%s5 + $0xe0] sm:$0xff]
    %v332 = vld [vmem:[%s5 + $0xe8] sm:$0xff]
    %v333 = vld [vmem:[%s5 + $0xf0] sm:$0xff]
    %v334 = vld [vmem:[%s5 + $0xf8] sm:$0xff]
    %v335 = vld [vmem:[%s6] sm:$0x1]
    %v337 = vlaneseq
    %v338 = vshrl.u32 %v337, 7
    %v339 = vsub.s32 0, %v338
    %v340 = vrot.slane %v335, %v339
    %342 = vmatprep.subr.mxu0 0.0
    %343 = vmatpush1.msra.mxu0 %v303
    %344 = vmatprep.subr.mxu0 0.0
    %345 = vmatpush1.msra.mxu0 %v304
    %346 = vmatprep.subr.mxu0 0.0
    %347 = vmatpush1.msra.mxu0 %v305
    %348 = vmatprep.subr.mxu0 0.0
    %349 = vmatpush1.msra.mxu0 %v306
    %350 = vmatprep.subr.mxu0 0.0
    %351 = vmatpush1.msra.mxu0 %v307
    %352 = vmatprep.subr.mxu0 0.0
    %353 = vmatpush1.msra.mxu0 %v308
    %354 = vmatprep.subr.mxu0 0.0
    %355 = vmatpush1.msra.mxu0 %v309
    %356 = vmatprep.subr.mxu0 0.0
    %357 = vmatpush1.msra.mxu0 %v310
    %358 = vmatprep.subr.mxu0 0.0
    %359 = vmatpush1.msra.mxu0 %v311
    %360 = vmatprep.subr.mxu0 0.0
    %361 = vmatpush1.msra.mxu0 %v312
    %362 = vmatprep.subr.mxu0 0.0
    %363 = vmatpush1.msra.mxu0 %v313
    %364 = vmatprep.subr.mxu0 0.0
    %365 = vmatpush1.msra.mxu0 %v314
    %366 = vmatprep.subr.mxu0 0.0
    %367 = vmatpush1.msra.mxu0 %v315
    %368 = vmatprep.subr.mxu0 0.0
    %369 = vmatpush1.msra.mxu0 %v316
    %370 = vmatprep.subr.mxu0 0.0
    %371 = vmatpush1.msra.mxu0 %v317
    %372 = vmatprep.subr.mxu0 0.0
    %373 = vmatpush1.msra.mxu0 %v318
    %374 = vmatprep.subr.mxu0 0.0
    %375 = vmatpush1.msra.mxu0 %v319
    %376 = vmatprep.subr.mxu0 0.0
    %377 = vmatpush1.msra.mxu0 %v320
    %378 = vmatprep.subr.mxu0 0.0
    %379 = vmatpush1.msra.mxu0 %v321
    %380 = vmatprep.subr.mxu0 0.0
    %381 = vmatpush1.msra.mxu0 %v322
    %382 = vmatprep.subr.mxu0 0.0
    %383 = vmatpush1.msra.mxu0 %v323
    %384 = vmatprep.subr.mxu0 0.0
    %385 = vmatpush1.msra.mxu0 %v324
    %386 = vmatprep.subr.mxu0 0.0
    %387 = vmatpush1.msra.mxu0 %v325
    %388 = vmatprep.subr.mxu0 0.0
    %389 = vmatpush1.msra.mxu0 %v326
    %390 = vmatprep.subr.mxu0 0.0
    %391 = vmatpush1.msra.mxu0 %v327
    %392 = vmatprep.subr.mxu0 0.0
    %393 = vmatpush1.msra.mxu0 %v328
    %394 = vmatprep.subr.mxu0 0.0
    %395 = vmatpush1.msra.mxu0 %v329
    %396 = vmatprep.subr.mxu0 0.0
    %397 = vmatpush1.msra.mxu0 %v330
    %398 = vmatprep.subr.mxu0 0.0
    %399 = vmatpush1.msra.mxu0 %v331
    %400 = vmatprep.subr.mxu0 0.0
    %401 = vmatpush1.msra.mxu0 %v332
    %402 = vmatprep.subr.mxu0 0.0
    %403 = vmatpush1.msra.mxu0 %v333
    %404 = vmatprep.subr.mxu0 0.0
    %405 = vmatpush1.msra.mxu0 %v334
    %406 = vmatprep.mubr.f32.mxu0 %v300
    %407 = vmatmul.mubr.f32.gmra.mrb[0].mxu0 %v299
    %v408 = vpop.f32.mrb[0].mxu0
    %v409 = vadd.f32 %v340, %v408
    %v410 = vpop.f32.mrb[0].mxu0
    %411 = vmatprep.mubr.f32.mxu0 %v302
    %412 = vmatmul.mubr.f32.gmra.mrb[0].mxu0 %v301
    %v413 = vpop.f32.mrb[0].mxu0
    %v414 = vadd.f32 %v340, %v413
    %v415 = vpop.f32.mrb[0].mxu0
    %416 = vdwg.mxu0
    %v417 = vtanh.pop %v409
    %v418 = vtanh.pop %v414
    %v419 = vmul.f32 %v417, 2.0
    %v420 = vmul.f32 %v418, 2.0
    %vm421 = vcmask 64512
    %422 = vst.msk [vmem:[%s7] sm:$0xff] %vm421, %v419
    %423 = vst.msk [vmem:[%s7 + $0x8] sm:$0xff] %vm421, %v420
    // Predicated region
    $region34: #{tpu_custom_call.1} parent=1 // pred_check
      _
    $region35: #{tpu_custom_call.1} parent=1 // pred_check_branch
      %425 = sbr.rel (0) target = $region37
    $region36: #{tpu_custom_call.1} parent=1 // pred_region
      _
    $region37: #{tpu_custom_call.1} parent=1 // pred_fallthru
      _
    // Predicated region
    $region38: #{tpu_custom_call.1} parent=1 // pred_check
      _
    $region39: #{tpu_custom_call.1} parent=1 // pred_check_branch
      %427 = sbr.rel (0) target = $region41
    $region40: #{tpu_custom_call.1} parent=1 // pred_region
      _
    $region41: #{tpu_custom_call.1} parent=1 // pred_fallthru
      _
    %428 = vsyncpa [#allocation3], 1

</llo_original>
